<compile_context>
chip_gen: v5e
topology: v5e:2x2
jax: 0.10.0
libtpu: 0.0.40
codegen_flags: <defaults>
</compile_context>

<pallas_src>
import numpy as np
import jax
import jax.numpy as jnp
from jax.experimental import pallas as pl
from jax.experimental.pallas import tpu as pltpu

_INV_SQRT2 = 0.7071067811865476


def _gelu(x):
    # Exact (erf-based) GELU, matching torch.nn.GELU(approximate='none'),
    # via the Abramowitz & Stegun 7.1.26 rational erf approximation
    # (~1.5e-7 abs err).  The divide goes to the EUP via pl.reciprocal.
    a1, a2, a3, a4, a5 = (0.254829592, -0.284496736, 1.421413741,
                          -1.453152027, 1.061405429)
    p = 0.3275911
    u = x * _INV_SQRT2
    s = jnp.where(u < 0.0, -1.0, 1.0)
    au = jnp.abs(u)
    t = pl.reciprocal(1.0 + p * au, approx=True)
    poly = ((((a5 * t + a4) * t + a3) * t + a2) * t + a1) * t
    erf = s * (1.0 - poly * jnp.exp(-au * au))
    return 0.5 * x * (1.0 + erf)


def _tap_masks(B, H, W):
    """(9, B*H*W) float32 validity masks for the 3x3 SAME-padding taps."""
    b, h, w = np.meshgrid(np.arange(B), np.arange(H), np.arange(W),
                          indexing="ij")
    del b
    m = np.zeros((9, B * H * W), np.float32)
    for k in range(9):
        dy, dx = k // 3 - 1, k % 3 - 1
        valid = ((h + dy >= 0) & (h + dy < H) &
                 (w + dx >= 0) & (w + dx < W))
        m[k] = valid.reshape(-1).astype(np.float32)
    return jnp.asarray(m)


def mlp_forward(x, params):
    (w1, b1, s1, t1, wd9, bd, s2, t2, w2, b2, s3, t3) = params
    B, H, W, Cin = x.shape
    Ch = w1.shape[1]
    Cout = w2.shape[1]
    N = B * H * W
    R = max(Ch, Cout)

    # ---- pack every parameter into a single (R, K) array:
    #      channels on sublanes, parameter index on lanes -------------------
    def rows(a):
        return jnp.pad(a, ((0, R - a.shape[0]), (0, 0)))

    OW1, OWD, OW2 = 0, Cin, Cin + 9
    OV = Cin + 9 + Ch
    (OB1, OS1, OT1, OBD, OS2, OT2, OB2, OS3, OT3) = [OV + i for i in range(9)]
    pack = jnp.concatenate(
        [rows(w1.T), rows(wd9.T), rows(w2.T)]
        + [rows(v[:, None]) for v in (b1, s1, t1, bd, s2, t2, b2, s3, t3)],
        axis=1).astype(jnp.float32)

    masks = _tap_masks(B, H, W)

    # lane-dense layout: (C, B*H*W)  (layout plumbing done in the wrapper)
    x_t = jnp.transpose(x, (3, 0, 1, 2)).reshape(Cin, N).astype(jnp.float32)

    def kernel(x_ref, p_ref, m_ref, o_ref):
        def col(off, nrows):                 # (nrows, 1) parameter column
            return p_ref[0:nrows, off:off + 1]

        # ---- conv1: 1x1 conv as broadcast-FMA + bias, GELU, BN (eval) ----
        h = jnp.zeros((Ch, N), jnp.float32)
        for ci in range(Cin):
            h = h + col(OW1 + ci, Ch) * x_ref[ci:ci + 1, :]
        h = _gelu(h + col(OB1, Ch))
        h = h * col(OS1, Ch) + col(OT1, Ch)
        # dropout(p=0.0) -> identity

        # ---- proj: depthwise 3x3 (SAME) via in-register lane rolls -------
        acc = jnp.zeros((Ch, N), jnp.float32)
        for k in range(9):
            dy, dx = k // 3 - 1, k % 3 - 1
            d = dy * W + dx                  # flattened neighbour offset
            if d == 0:
                tap = h
            else:
                tap = pltpu.roll(h, shift=(-d) % N, axis=1) * m_ref[k:k + 1, :]
            acc = acc + tap * col(OWD + k, Ch)
        y = acc + col(OBD, Ch) + h           # depthwise bias + residual
        y = _gelu(y)                         # proj_act
        y = y * col(OS2, Ch) + col(OT2, Ch)  # proj_bn (eval)

        # ---- conv2: 1x1 conv as broadcast-FMA + bias, BN (eval) ----------
        z = jnp.zeros((Cout, N), jnp.float32)
        for cj in range(Ch):
            z = z + col(OW2 + cj, Cout) * y[cj:cj + 1, :]
        z = z + col(OB2, Cout)
        z = z * col(OS3, Cout) + col(OT3, Cout)
        # dropout(p=0.0) -> identity
        o_ref[...] = z.astype(o_ref.dtype)

    out_t = pl.pallas_call(
        kernel,
        out_shape=jax.ShapeDtypeStruct((Cout, N), jnp.float32),
    )(x_t, pack, masks)

    return out_t.reshape(Cout, B, H, W).transpose(1, 2, 3, 0)


def mlp_reference(x, params):
    """Pure-JAX reference of the same forward (for validation only)."""
    (w1, b1, s1, t1, wd9, bd, s2, t2, w2, b2, s3, t3) = params
    Ch = w1.shape[1]
    h = jnp.einsum('bhwc,cd->bhwd', x, w1) + b1
    h = jax.nn.gelu(h, approximate=False)
    h = h * s1 + t1
    w_hwio = wd9.reshape(3, 3, 1, Ch)
    d = jax.lax.conv_general_dilated(
        h, w_hwio, window_strides=(1, 1), padding='SAME',
        dimension_numbers=('NHWC', 'HWIO', 'NHWC'),
        feature_group_count=Ch) + bd
    y = jax.nn.gelu(d + h, approximate=False)
    y = y * s2 + t2
    z = jnp.einsum('bhwc,cd->bhwd', y, w2) + b2
    return z * s3 + t3


if __name__ == "__main__":
    key = jax.random.PRNGKey(0)
    B, H, W = 2, 16, 16
    Cin, Ch, Cout = 4, 8, 4   # in_features=4, hidden_features=8, out_features=4
    ks = jax.random.split(key, 20)

    x = jax.random.normal(ks[0], (B, H, W, Cin), jnp.float32)

    def bn_fold(kg, kb, km, kv, C, eps=1e-5):
        gamma = 1.0 + 0.1 * jax.random.normal(kg, (C,), jnp.float32)
        beta = 0.1 * jax.random.normal(kb, (C,), jnp.float32)
        mean = 0.1 * jax.random.normal(km, (C,), jnp.float32)
        var = 0.5 + jax.random.uniform(kv, (C,), dtype=jnp.float32)
        scale = gamma / jnp.sqrt(var + eps)
        shift = beta - mean * scale
        return scale, shift

    # conv1 (1x1): torch weight (Ch, Cin, 1, 1) -> stored as (Cin, Ch)
    w1 = 0.2 * jax.random.normal(ks[1], (Cin, Ch), jnp.float32)
    b1 = 0.1 * jax.random.normal(ks[2], (Ch,), jnp.float32)
    s1, t1 = bn_fold(ks[3], ks[4], ks[5], ks[6], Ch)

    # proj (depthwise 3x3): torch weight (Ch, 1, 3, 3) -> stored tap-major (9, Ch)
    wd9 = 0.2 * jax.random.normal(ks[7], (9, Ch), jnp.float32)
    bd = 0.1 * jax.random.normal(ks[8], (Ch,), jnp.float32)
    s2, t2 = bn_fold(ks[9], ks[10], ks[11], ks[12], Ch)

    # conv2 (1x1): torch weight (Cout, Ch, 1, 1) -> stored as (Ch, Cout)
    w2 = 0.2 * jax.random.normal(ks[13], (Ch, Cout), jnp.float32)
    b2 = 0.1 * jax.random.normal(ks[14], (Cout,), jnp.float32)
    s3, t3 = bn_fold(ks[15], ks[16], ks[17], ks[18], Cout)

    params = (w1, b1, s1, t1, wd9, bd, s2, t2, w2, b2, s3, t3)

    out = mlp_forward(x, params)
    out = jax.block_until_ready(out)

    ref = mlp_reference(x, params)
    assert out.shape == (B, H, W, Cout)
    if not bool(jnp.allclose(out, ref, atol=2e-2, rtol=2e-2)):
        max_err = float(jnp.max(jnp.abs(out - ref)))
        raise AssertionError(f"mismatch vs reference, max abs err = {max_err}")

    print("KERNEL_OK")
</pallas_src>

<mosaic_0001>
module attributes {stable_mosaic.version = 11 : i64} {
  func.func @kernel(%arg0: memref<4x512xf32, #tpu.memory_space<vmem>>, %arg1: memref<8x30xf32, #tpu.memory_space<vmem>>, %arg2: memref<9x512xf32, #tpu.memory_space<vmem>>, %arg3: memref<4x512xf32, #tpu.memory_space<vmem>>) attributes {dimension_semantics = [], scalar_prefetch = 0 : i64, scratch_operands = 0 : i64, tpu.core_type = #tpu.core_type<tc>} {
    %cst = arith.constant 0.000000e+00 : f32
    %0 = vector.broadcast %cst : f32 to vector<8x512xf32>
    %c0 = arith.constant 0 : index
    %c0_0 = arith.constant 0 : index
    %1 = vector.load %arg1[%c0, %c0_0] : memref<8x30xf32, #tpu.memory_space<vmem>>, vector<8x1xf32>
    %c0_1 = arith.constant 0 : index
    %c0_2 = arith.constant 0 : index
    %2 = vector.load %arg0[%c0_1, %c0_2] : memref<4x512xf32, #tpu.memory_space<vmem>>, vector<1x512xf32>
    %3 = vector.broadcast %1 : vector<8x1xf32> to vector<8x512xf32>
    %4 = vector.broadcast %2 : vector<1x512xf32> to vector<8x512xf32>
    %5 = arith.mulf %3, %4 : vector<8x512xf32>
    %6 = arith.addf %0, %5 : vector<8x512xf32>
    %c0_3 = arith.constant 0 : index
    %c1 = arith.constant 1 : index
    %7 = vector.load %arg1[%c0_3, %c1] : memref<8x30xf32, #tpu.memory_space<vmem>>, vector<8x1xf32>
    %c1_4 = arith.constant 1 : index
    %c0_5 = arith.constant 0 : index
    %8 = vector.load %arg0[%c1_4, %c0_5] : memref<4x512xf32, #tpu.memory_space<vmem>>, vector<1x512xf32>
    %9 = vector.broadcast %7 : vector<8x1xf32> to vector<8x512xf32>
    %10 = vector.broadcast %8 : vector<1x512xf32> to vector<8x512xf32>
    %11 = arith.mulf %9, %10 : vector<8x512xf32>
    %12 = arith.addf %6, %11 : vector<8x512xf32>
    %c0_6 = arith.constant 0 : index
    %c2 = arith.constant 2 : index
    %13 = vector.load %arg1[%c0_6, %c2] : memref<8x30xf32, #tpu.memory_space<vmem>>, vector<8x1xf32>
    %c2_7 = arith.constant 2 : index
    %c0_8 = arith.constant 0 : index
    %14 = vector.load %arg0[%c2_7, %c0_8] : memref<4x512xf32, #tpu.memory_space<vmem>>, vector<1x512xf32>
    %15 = vector.broadcast %13 : vector<8x1xf32> to vector<8x512xf32>
    %16 = vector.broadcast %14 : vector<1x512xf32> to vector<8x512xf32>
    %17 = arith.mulf %15, %16 : vector<8x512xf32>
    %18 = arith.addf %12, %17 : vector<8x512xf32>
    %c0_9 = arith.constant 0 : index
    %c3 = arith.constant 3 : index
    %19 = vector.load %arg1[%c0_9, %c3] : memref<8x30xf32, #tpu.memory_space<vmem>>, vector<8x1xf32>
    %c3_10 = arith.constant 3 : index
    %c0_11 = arith.constant 0 : index
    %20 = vector.load %arg0[%c3_10, %c0_11] : memref<4x512xf32, #tpu.memory_space<vmem>>, vector<1x512xf32>
    %21 = vector.broadcast %19 : vector<8x1xf32> to vector<8x512xf32>
    %22 = vector.broadcast %20 : vector<1x512xf32> to vector<8x512xf32>
    %23 = arith.mulf %21, %22 : vector<8x512xf32>
    %24 = arith.addf %18, %23 : vector<8x512xf32>
    %c0_12 = arith.constant 0 : index
    %c21 = arith.constant 21 : index
    %25 = vector.load %arg1[%c0_12, %c21] : memref<8x30xf32, #tpu.memory_space<vmem>>, vector<8x1xf32>
    %26 = vector.broadcast %25 : vector<8x1xf32> to vector<8x512xf32>
    %27 = arith.addf %24, %26 : vector<8x512xf32>
    %cst_13 = arith.constant 0.707106769 : f32
    %28 = vector.broadcast %cst_13 : f32 to vector<8x512xf32>
    %29 = arith.mulf %27, %28 : vector<8x512xf32>
    %cst_14 = arith.constant 0.000000e+00 : f32
    %30 = vector.broadcast %cst_14 : f32 to vector<8x512xf32>
    %31 = arith.cmpf olt, %29, %30 : vector<8x512xf32>
    %cst_15 = arith.constant -1.000000e+00 : f32
    %cst_16 = arith.constant 1.000000e+00 : f32
    %32 = vector.broadcast %cst_15 : f32 to vector<8x512xf32>
    %33 = vector.broadcast %cst_16 : f32 to vector<8x512xf32>
    %34 = arith.select %31, %32, %33 : vector<8x512xi1>, vector<8x512xf32>
    %35 = math.absf %29 : vector<8x512xf32>
    %cst_17 = arith.constant 0.327591091 : f32
    %36 = vector.broadcast %cst_17 : f32 to vector<8x512xf32>
    %37 = arith.mulf %36, %35 : vector<8x512xf32>
    %cst_18 = arith.constant 1.000000e+00 : f32
    %38 = vector.broadcast %cst_18 : f32 to vector<8x512xf32>
    %39 = arith.addf %38, %37 : vector<8x512xf32>
    %40 = tpu.reciprocal %39 {approx = true} : vector<8x512xf32> -> vector<8x512xf32>
    %cst_19 = arith.constant 1.06140542 : f32
    %41 = vector.broadcast %cst_19 : f32 to vector<8x512xf32>
    %42 = arith.mulf %41, %40 : vector<8x512xf32>
    %cst_20 = arith.constant -1.45315206 : f32
    %43 = vector.broadcast %cst_20 : f32 to vector<8x512xf32>
    %44 = arith.addf %42, %43 : vector<8x512xf32>
    %45 = arith.mulf %44, %40 : vector<8x512xf32>
    %cst_21 = arith.constant 1.42141378 : f32
    %46 = vector.broadcast %cst_21 : f32 to vector<8x512xf32>
    %47 = arith.addf %45, %46 : vector<8x512xf32>
    %48 = arith.mulf %47, %40 : vector<8x512xf32>
    %cst_22 = arith.constant -0.284496725 : f32
    %49 = vector.broadcast %cst_22 : f32 to vector<8x512xf32>
    %50 = arith.addf %48, %49 : vector<8x512xf32>
    %51 = arith.mulf %50, %40 : vector<8x512xf32>
    %cst_23 = arith.constant 0.254829586 : f32
    %52 = vector.broadcast %cst_23 : f32 to vector<8x512xf32>
    %53 = arith.addf %51, %52 : vector<8x512xf32>
    %54 = arith.mulf %53, %40 : vector<8x512xf32>
    %cst_24 = arith.constant 0.000000e+00 : f32
    %55 = vector.broadcast %cst_24 : f32 to vector<8x512xf32>
    %56 = arith.subf %55, %35 : vector<8x512xf32>
    %57 = arith.mulf %56, %35 : vector<8x512xf32>
    %58 = math.exp %57 : vector<8x512xf32>
    %59 = arith.mulf %54, %58 : vector<8x512xf32>
    %cst_25 = arith.constant 1.000000e+00 : f32
    %60 = vector.broadcast %cst_25 : f32 to vector<8x512xf32>
    %61 = arith.subf %60, %59 : vector<8x512xf32>
    %62 = arith.mulf %34, %61 : vector<8x512xf32>
    %cst_26 = arith.constant 5.000000e-01 : f32
    %63 = vector.broadcast %cst_26 : f32 to vector<8x512xf32>
    %64 = arith.mulf %63, %27 : vector<8x512xf32>
    %cst_27 = arith.constant 1.000000e+00 : f32
    %65 = vector.broadcast %cst_27 : f32 to vector<8x512xf32>
    %66 = arith.addf %65, %62 : vector<8x512xf32>
    %67 = arith.mulf %64, %66 : vector<8x512xf32>
    %c0_28 = arith.constant 0 : index
    %c22 = arith.constant 22 : index
    %68 = vector.load %arg1[%c0_28, %c22] : memref<8x30xf32, #tpu.memory_space<vmem>>, vector<8x1xf32>
    %69 = vector.broadcast %68 : vector<8x1xf32> to vector<8x512xf32>
    %70 = arith.mulf %67, %69 : vector<8x512xf32>
    %c0_29 = arith.constant 0 : index
    %c23 = arith.constant 23 : index
    %71 = vector.load %arg1[%c0_29, %c23] : memref<8x30xf32, #tpu.memory_space<vmem>>, vector<8x1xf32>
    %72 = vector.broadcast %71 : vector<8x1xf32> to vector<8x512xf32>
    %73 = arith.addf %70, %72 : vector<8x512xf32>
    %cst_30 = arith.constant 0.000000e+00 : f32
    %74 = vector.broadcast %cst_30 : f32 to vector<8x512xf32>
    %c17_i32 = arith.constant 17 : i32
    %75 = tpu.dynamic_rotate %73 by %c17_i32 dim 1 : vector<8x512xf32>, i32 -> vector<8x512xf32>
    %c0_31 = arith.constant 0 : index
    %c0_32 = arith.constant 0 : index
    %76 = vector.load %arg2[%c0_31, %c0_32] : memref<9x512xf32, #tpu.memory_space<vmem>>, vector<1x512xf32>
    %77 = vector.broadcast %76 : vector<1x512xf32> to vector<8x512xf32>
    %78 = arith.mulf %75, %77 : vector<8x512xf32>
    %c0_33 = arith.constant 0 : index
    %c4 = arith.constant 4 : index
    %79 = vector.load %arg1[%c0_33, %c4] : memref<8x30xf32, #tpu.memory_space<vmem>>, vector<8x1xf32>
    %80 = vector.broadcast %79 : vector<8x1xf32> to vector<8x512xf32>
    %81 = arith.mulf %78, %80 : vector<8x512xf32>
    %82 = arith.addf %74, %81 : vector<8x512xf32>
    %c16_i32 = arith.constant 16 : i32
    %83 = tpu.dynamic_rotate %73 by %c16_i32 dim 1 : vector<8x512xf32>, i32 -> vector<8x512xf32>
    %c1_34 = arith.constant 1 : index
    %c0_35 = arith.constant 0 : index
    %84 = vector.load %arg2[%c1_34, %c0_35] : memref<9x512xf32, #tpu.memory_space<vmem>>, vector<1x512xf32>
    %85 = vector.broadcast %84 : vector<1x512xf32> to vector<8x512xf32>
    %86 = arith.mulf %83, %85 : vector<8x512xf32>
    %c0_36 = arith.constant 0 : index
    %c5 = arith.constant 5 : index
    %87 = vector.load %arg1[%c0_36, %c5] : memref<8x30xf32, #tpu.memory_space<vmem>>, vector<8x1xf32>
    %88 = vector.broadcast %87 : vector<8x1xf32> to vector<8x512xf32>
    %89 = arith.mulf %86, %88 : vector<8x512xf32>
    %90 = arith.addf %82, %89 : vector<8x512xf32>
    %c15_i32 = arith.constant 15 : i32
    %91 = tpu.dynamic_rotate %73 by %c15_i32 dim 1 : vector<8x512xf32>, i32 -> vector<8x512xf32>
    %c2_37 = arith.constant 2 : index
    %c0_38 = arith.constant 0 : index
    %92 = vector.load %arg2[%c2_37, %c0_38] : memref<9x512xf32, #tpu.memory_space<vmem>>, vector<1x512xf32>
    %93 = vector.broadcast %92 : vector<1x512xf32> to vector<8x512xf32>
    %94 = arith.mulf %91, %93 : vector<8x512xf32>
    %c0_39 = arith.constant 0 : index
    %c6 = arith.constant 6 : index
    %95 = vector.load %arg1[%c0_39, %c6] : memref<8x30xf32, #tpu.memory_space<vmem>>, vector<8x1xf32>
    %96 = vector.broadcast %95 : vector<8x1xf32> to vector<8x512xf32>
    %97 = arith.mulf %94, %96 : vector<8x512xf32>
    %98 = arith.addf %90, %97 : vector<8x512xf32>
    %c1_i32 = arith.constant 1 : i32
    %99 = tpu.dynamic_rotate %73 by %c1_i32 dim 1 : vector<8x512xf32>, i32 -> vector<8x512xf32>
    %c3_40 = arith.constant 3 : index
    %c0_41 = arith.constant 0 : index
    %100 = vector.load %arg2[%c3_40, %c0_41] : memref<9x512xf32, #tpu.memory_space<vmem>>, vector<1x512xf32>
    %101 = vector.broadcast %100 : vector<1x512xf32> to vector<8x512xf32>
    %102 = arith.mulf %99, %101 : vector<8x512xf32>
    %c0_42 = arith.constant 0 : index
    %c7 = arith.constant 7 : index
    %103 = vector.load %arg1[%c0_42, %c7] : memref<8x30xf32, #tpu.memory_space<vmem>>, vector<8x1xf32>
    %104 = vector.broadcast %103 : vector<8x1xf32> to vector<8x512xf32>
    %105 = arith.mulf %102, %104 : vector<8x512xf32>
    %106 = arith.addf %98, %105 : vector<8x512xf32>
    %c0_43 = arith.constant 0 : index
    %c8 = arith.constant 8 : index
    %107 = vector.load %arg1[%c0_43, %c8] : memref<8x30xf32, #tpu.memory_space<vmem>>, vector<8x1xf32>
    %108 = vector.broadcast %107 : vector<8x1xf32> to vector<8x512xf32>
    %109 = arith.mulf %73, %108 : vector<8x512xf32>
    %110 = arith.addf %106, %109 : vector<8x512xf32>
    %c511_i32 = arith.constant 511 : i32
    %111 = tpu.dynamic_rotate %73 by %c511_i32 dim 1 : vector<8x512xf32>, i32 -> vector<8x512xf32>
    %c5_44 = arith.constant 5 : index
    %c0_45 = arith.constant 0 : index
    %112 = vector.load %arg2[%c5_44, %c0_45] : memref<9x512xf32, #tpu.memory_space<vmem>>, vector<1x512xf32>
    %113 = vector.broadcast %112 : vector<1x512xf32> to vector<8x512xf32>
    %114 = arith.mulf %111, %113 : vector<8x512xf32>
    %c0_46 = arith.constant 0 : index
    %c9 = arith.constant 9 : index
    %115 = vector.load %arg1[%c0_46, %c9] : memref<8x30xf32, #tpu.memory_space<vmem>>, vector<8x1xf32>
    %116 = vector.broadcast %115 : vector<8x1xf32> to vector<8x512xf32>
    %117 = arith.mulf %114, %116 : vector<8x512xf32>
    %118 = arith.addf %110, %117 : vector<8x512xf32>
    %c497_i32 = arith.constant 497 : i32
    %119 = tpu.dynamic_rotate %73 by %c497_i32 dim 1 : vector<8x512xf32>, i32 -> vector<8x512xf32>
    %c6_47 = arith.constant 6 : index
    %c0_48 = arith.constant 0 : index
    %120 = vector.load %arg2[%c6_47, %c0_48] : memref<9x512xf32, #tpu.memory_space<vmem>>, vector<1x512xf32>
    %121 = vector.broadcast %120 : vector<1x512xf32> to vector<8x512xf32>
    %122 = arith.mulf %119, %121 : vector<8x512xf32>
    %c0_49 = arith.constant 0 : index
    %c10 = arith.constant 10 : index
    %123 = vector.load %arg1[%c0_49, %c10] : memref<8x30xf32, #tpu.memory_space<vmem>>, vector<8x1xf32>
    %124 = vector.broadcast %123 : vector<8x1xf32> to vector<8x512xf32>
    %125 = arith.mulf %122, %124 : vector<8x512xf32>
    %126 = arith.addf %118, %125 : vector<8x512xf32>
    %c496_i32 = arith.constant 496 : i32
    %127 = tpu.dynamic_rotate %73 by %c496_i32 dim 1 : vector<8x512xf32>, i32 -> vector<8x512xf32>
    %c7_50 = arith.constant 7 : index
    %c0_51 = arith.constant 0 : index
    %128 = vector.load %arg2[%c7_50, %c0_51] : memref<9x512xf32, #tpu.memory_space<vmem>>, vector<1x512xf32>
    %129 = vector.broadcast %128 : vector<1x512xf32> to vector<8x512xf32>
    %130 = arith.mulf %127, %129 : vector<8x512xf32>
    %c0_52 = arith.constant 0 : index
    %c11 = arith.constant 11 : index
    %131 = vector.load %arg1[%c0_52, %c11] : memref<8x30xf32, #tpu.memory_space<vmem>>, vector<8x1xf32>
    %132 = vector.broadcast %131 : vector<8x1xf32> to vector<8x512xf32>
    %133 = arith.mulf %130, %132 : vector<8x512xf32>
    %134 = arith.addf %126, %133 : vector<8x512xf32>
    %c495_i32 = arith.constant 495 : i32
    %135 = tpu.dynamic_rotate %73 by %c495_i32 dim 1 : vector<8x512xf32>, i32 -> vector<8x512xf32>
    %c8_53 = arith.constant 8 : index
    %c0_54 = arith.constant 0 : index
    %136 = vector.load %arg2[%c8_53, %c0_54] : memref<9x512xf32, #tpu.memory_space<vmem>>, vector<1x512xf32>
    %137 = vector.broadcast %136 : vector<1x512xf32> to vector<8x512xf32>
    %138 = arith.mulf %135, %137 : vector<8x512xf32>
    %c0_55 = arith.constant 0 : index
    %c12 = arith.constant 12 : index
    %139 = vector.load %arg1[%c0_55, %c12] : memref<8x30xf32, #tpu.memory_space<vmem>>, vector<8x1xf32>
    %140 = vector.broadcast %139 : vector<8x1xf32> to vector<8x512xf32>
    %141 = arith.mulf %138, %140 : vector<8x512xf32>
    %142 = arith.addf %134, %141 : vector<8x512xf32>
    %c0_56 = arith.constant 0 : index
    %c24 = arith.constant 24 : index
    %143 = vector.load %arg1[%c0_56, %c24] : memref<8x30xf32, #tpu.memory_space<vmem>>, vector<8x1xf32>
    %144 = vector.broadcast %143 : vector<8x1xf32> to vector<8x512xf32>
    %145 = arith.addf %142, %144 : vector<8x512xf32>
    %146 = arith.addf %145, %73 : vector<8x512xf32>
    %cst_57 = arith.constant 0.707106769 : f32
    %147 = vector.broadcast %cst_57 : f32 to vector<8x512xf32>
    %148 = arith.mulf %146, %147 : vector<8x512xf32>
    %cst_58 = arith.constant 0.000000e+00 : f32
    %149 = vector.broadcast %cst_58 : f32 to vector<8x512xf32>
    %150 = arith.cmpf olt, %148, %149 : vector<8x512xf32>
    %cst_59 = arith.constant -1.000000e+00 : f32
    %cst_60 = arith.constant 1.000000e+00 : f32
    %151 = vector.broadcast %cst_59 : f32 to vector<8x512xf32>
    %152 = vector.broadcast %cst_60 : f32 to vector<8x512xf32>
    %153 = arith.select %150, %151, %152 : vector<8x512xi1>, vector<8x512xf32>
    %154 = math.absf %148 : vector<8x512xf32>
    %cst_61 = arith.constant 0.327591091 : f32
    %155 = vector.broadcast %cst_61 : f32 to vector<8x512xf32>
    %156 = arith.mulf %155, %154 : vector<8x512xf32>
    %cst_62 = arith.constant 1.000000e+00 : f32
    %157 = vector.broadcast %cst_62 : f32 to vector<8x512xf32>
    %158 = arith.addf %157, %156 : vector<8x512xf32>
    %159 = tpu.reciprocal %158 {approx = true} : vector<8x512xf32> -> vector<8x512xf32>
    %cst_63 = arith.constant 1.06140542 : f32
    %160 = vector.broadcast %cst_63 : f32 to vector<8x512xf32>
    %161 = arith.mulf %160, %159 : vector<8x512xf32>
    %cst_64 = arith.constant -1.45315206 : f32
    %162 = vector.broadcast %cst_64 : f32 to vector<8x512xf32>
    %163 = arith.addf %161, %162 : vector<8x512xf32>
    %164 = arith.mulf %163, %159 : vector<8x512xf32>
    %cst_65 = arith.constant 1.42141378 : f32
    %165 = vector.broadcast %cst_65 : f32 to vector<8x512xf32>
    %166 = arith.addf %164, %165 : vector<8x512xf32>
    %167 = arith.mulf %166, %159 : vector<8x512xf32>
    %cst_66 = arith.constant -0.284496725 : f32
    %168 = vector.broadcast %cst_66 : f32 to vector<8x512xf32>
    %169 = arith.addf %167, %168 : vector<8x512xf32>
    %170 = arith.mulf %169, %159 : vector<8x512xf32>
    %cst_67 = arith.constant 0.254829586 : f32
    %171 = vector.broadcast %cst_67 : f32 to vector<8x512xf32>
    %172 = arith.addf %170, %171 : vector<8x512xf32>
    %173 = arith.mulf %172, %159 : vector<8x512xf32>
    %cst_68 = arith.constant 0.000000e+00 : f32
    %174 = vector.broadcast %cst_68 : f32 to vector<8x512xf32>
    %175 = arith.subf %174, %154 : vector<8x512xf32>
    %176 = arith.mulf %175, %154 : vector<8x512xf32>
    %177 = math.exp %176 : vector<8x512xf32>
    %178 = arith.mulf %173, %177 : vector<8x512xf32>
    %cst_69 = arith.constant 1.000000e+00 : f32
    %179 = vector.broadcast %cst_69 : f32 to vector<8x512xf32>
    %180 = arith.subf %179, %178 : vector<8x512xf32>
    %181 = arith.mulf %153, %180 : vector<8x512xf32>
    %cst_70 = arith.constant 5.000000e-01 : f32
    %182 = vector.broadcast %cst_70 : f32 to vector<8x512xf32>
    %183 = arith.mulf %182, %146 : vector<8x512xf32>
    %cst_71 = arith.constant 1.000000e+00 : f32
    %184 = vector.broadcast %cst_71 : f32 to vector<8x512xf32>
    %185 = arith.addf %184, %181 : vector<8x512xf32>
    %186 = arith.mulf %183, %185 : vector<8x512xf32>
    %c0_72 = arith.constant 0 : index
    %c25 = arith.constant 25 : index
    %187 = vector.load %arg1[%c0_72, %c25] : memref<8x30xf32, #tpu.memory_space<vmem>>, vector<8x1xf32>
    %188 = vector.broadcast %187 : vector<8x1xf32> to vector<8x512xf32>
    %189 = arith.mulf %186, %188 : vector<8x512xf32>
    %c0_73 = arith.constant 0 : index
    %c26 = arith.constant 26 : index
    %190 = vector.load %arg1[%c0_73, %c26] : memref<8x30xf32, #tpu.memory_space<vmem>>, vector<8x1xf32>
    %191 = vector.broadcast %190 : vector<8x1xf32> to vector<8x512xf32>
    %192 = arith.addf %189, %191 : vector<8x512xf32>
    %cst_74 = arith.constant 0.000000e+00 : f32
    %193 = vector.broadcast %cst_74 : f32 to vector<4x512xf32>
    %c0_75 = arith.constant 0 : index
    %c13 = arith.constant 13 : index
    %194 = vector.load %arg1[%c0_75, %c13] : memref<8x30xf32, #tpu.memory_space<vmem>>, vector<4x1xf32>
    %195 = vector.extract_strided_slice %192 {offsets = [0, 0], sizes = [1, 512], strides = [1, 1]} : vector<8x512xf32> to vector<1x512xf32>
    %196 = vector.broadcast %194 : vector<4x1xf32> to vector<4x512xf32>
    %197 = vector.broadcast %195 : vector<1x512xf32> to vector<4x512xf32>
    %198 = arith.mulf %196, %197 : vector<4x512xf32>
    %199 = arith.addf %193, %198 : vector<4x512xf32>
    %c0_76 = arith.constant 0 : index
    %c14 = arith.constant 14 : index
    %200 = vector.load %arg1[%c0_76, %c14] : memref<8x30xf32, #tpu.memory_space<vmem>>, vector<4x1xf32>
    %201 = vector.extract_strided_slice %192 {offsets = [1, 0], sizes = [1, 512], strides = [1, 1]} : vector<8x512xf32> to vector<1x512xf32>
    %202 = vector.broadcast %200 : vector<4x1xf32> to vector<4x512xf32>
    %203 = vector.broadcast %201 : vector<1x512xf32> to vector<4x512xf32>
    %204 = arith.mulf %202, %203 : vector<4x512xf32>
    %205 = arith.addf %199, %204 : vector<4x512xf32>
    %c0_77 = arith.constant 0 : index
    %c15 = arith.constant 15 : index
    %206 = vector.load %arg1[%c0_77, %c15] : memref<8x30xf32, #tpu.memory_space<vmem>>, vector<4x1xf32>
    %207 = vector.extract_strided_slice %192 {offsets = [2, 0], sizes = [1, 512], strides = [1, 1]} : vector<8x512xf32> to vector<1x512xf32>
    %208 = vector.broadcast %206 : vector<4x1xf32> to vector<4x512xf32>
    %209 = vector.broadcast %207 : vector<1x512xf32> to vector<4x512xf32>
    %210 = arith.mulf %208, %209 : vector<4x512xf32>
    %211 = arith.addf %205, %210 : vector<4x512xf32>
    %c0_78 = arith.constant 0 : index
    %c16 = arith.constant 16 : index
    %212 = vector.load %arg1[%c0_78, %c16] : memref<8x30xf32, #tpu.memory_space<vmem>>, vector<4x1xf32>
    %213 = vector.extract_strided_slice %192 {offsets = [3, 0], sizes = [1, 512], strides = [1, 1]} : vector<8x512xf32> to vector<1x512xf32>
    %214 = vector.broadcast %212 : vector<4x1xf32> to vector<4x512xf32>
    %215 = vector.broadcast %213 : vector<1x512xf32> to vector<4x512xf32>
    %216 = arith.mulf %214, %215 : vector<4x512xf32>
    %217 = arith.addf %211, %216 : vector<4x512xf32>
    %c0_79 = arith.constant 0 : index
    %c17 = arith.constant 17 : index
    %218 = vector.load %arg1[%c0_79, %c17] : memref<8x30xf32, #tpu.memory_space<vmem>>, vector<4x1xf32>
    %219 = vector.extract_strided_slice %192 {offsets = [4, 0], sizes = [1, 512], strides = [1, 1]} : vector<8x512xf32> to vector<1x512xf32>
    %220 = vector.broadcast %218 : vector<4x1xf32> to vector<4x512xf32>
    %221 = vector.broadcast %219 : vector<1x512xf32> to vector<4x512xf32>
    %222 = arith.mulf %220, %221 : vector<4x512xf32>
    %223 = arith.addf %217, %222 : vector<4x512xf32>
    %c0_80 = arith.constant 0 : index
    %c18 = arith.constant 18 : index
    %224 = vector.load %arg1[%c0_80, %c18] : memref<8x30xf32, #tpu.memory_space<vmem>>, vector<4x1xf32>
    %225 = vector.extract_strided_slice %192 {offsets = [5, 0], sizes = [1, 512], strides = [1, 1]} : vector<8x512xf32> to vector<1x512xf32>
    %226 = vector.broadcast %224 : vector<4x1xf32> to vector<4x512xf32>
    %227 = vector.broadcast %225 : vector<1x512xf32> to vector<4x512xf32>
    %228 = arith.mulf %226, %227 : vector<4x512xf32>
    %229 = arith.addf %223, %228 : vector<4x512xf32>
    %c0_81 = arith.constant 0 : index
    %c19 = arith.constant 19 : index
    %230 = vector.load %arg1[%c0_81, %c19] : memref<8x30xf32, #tpu.memory_space<vmem>>, vector<4x1xf32>
    %231 = vector.extract_strided_slice %192 {offsets = [6, 0], sizes = [1, 512], strides = [1, 1]} : vector<8x512xf32> to vector<1x512xf32>
    %232 = vector.broadcast %230 : vector<4x1xf32> to vector<4x512xf32>
    %233 = vector.broadcast %231 : vector<1x512xf32> to vector<4x512xf32>
    %234 = arith.mulf %232, %233 : vector<4x512xf32>
    %235 = arith.addf %229, %234 : vector<4x512xf32>
    %c0_82 = arith.constant 0 : index
    %c20 = arith.constant 20 : index
    %236 = vector.load %arg1[%c0_82, %c20] : memref<8x30xf32, #tpu.memory_space<vmem>>, vector<4x1xf32>
    %237 = vector.extract_strided_slice %192 {offsets = [7, 0], sizes = [1, 512], strides = [1, 1]} : vector<8x512xf32> to vector<1x512xf32>
    %238 = vector.broadcast %236 : vector<4x1xf32> to vector<4x512xf32>
    %239 = vector.broadcast %237 : vector<1x512xf32> to vector<4x512xf32>
    %240 = arith.mulf %238, %239 : vector<4x512xf32>
    %241 = arith.addf %235, %240 : vector<4x512xf32>
    %c0_83 = arith.constant 0 : index
    %c27 = arith.constant 27 : index
    %242 = vector.load %arg1[%c0_83, %c27] : memref<8x30xf32, #tpu.memory_space<vmem>>, vector<4x1xf32>
    %243 = vector.broadcast %242 : vector<4x1xf32> to vector<4x512xf32>
    %244 = arith.addf %241, %243 : vector<4x512xf32>
    %c0_84 = arith.constant 0 : index
    %c28 = arith.constant 28 : index
    %245 = vector.load %arg1[%c0_84, %c28] : memref<8x30xf32, #tpu.memory_space<vmem>>, vector<4x1xf32>
    %246 = vector.broadcast %245 : vector<4x1xf32> to vector<4x512xf32>
    %247 = arith.mulf %244, %246 : vector<4x512xf32>
    %c0_85 = arith.constant 0 : index
    %c29 = arith.constant 29 : index
    %248 = vector.load %arg1[%c0_85, %c29] : memref<8x30xf32, #tpu.memory_space<vmem>>, vector<4x1xf32>
    %249 = vector.broadcast %248 : vector<4x1xf32> to vector<4x512xf32>
    %250 = arith.addf %247, %249 : vector<4x512xf32>
    %c0_86 = arith.constant 0 : index
    %c0_87 = arith.constant 0 : index
    %251 = vector.load %arg3[%c0_86, %c0_87] : memref<4x512xf32, #tpu.memory_space<vmem>>, vector<4x512xf32>
    tpu.vector_store %arg3[%c0_86, %c0_87], %250 {strides = array<i32>} : memref<4x512xf32, #tpu.memory_space<vmem>>, vector<4x512xf32>,
    return
  }
}

</mosaic_0001>

<llo_original>
// kernel: tpu_custom_call.1
$region0: #{tpu_custom_call.1}
  #allocation0 [shape = 'u32[]', space=smem, size = 0x4, offset = 0x4, fixed_abs, tag = 'smem constant byte address 0x4 - core index']
  #allocation1 [shape = 'u32[72,128]{1,0:T(1,128)}', space=vmem, size = 0x9000, scoped, tag = 'internal scratch']
  %s0 = inlined_call_operand.hbm [shape: f32[4,512], index: 0, kind: input, shape index: {}]
  %s1 = inlined_call_operand.hbm [shape: f32[8,30], index: 1, kind: input, shape index: {}]
  %s2 = inlined_call_operand.hbm [shape: f32[9,512], index: 2, kind: input, shape index: {}]
  %s3 = inlined_call_operand.hbm [shape: f32[4,512], index: 3, kind: output, shape index: {}]
  %s4 = sld [smem:[#allocation0]]
  $region34: #{tpu_custom_call.1} parent=0
    _
  %s6 = ssub.s32 1, %s4
  %s7 = scalar_select 0, %s6, %s4
  $region1: #{tpu_custom_call.1} parent=0
    #allocation2 [shape = 'u8[8192]{0}', space=vmem, size = 0x2000, scoped, tag = 'input window, operand 0, single buffered']
    #allocation3 [shape = 's32[1]{0}', space=sflag, size = 0x4, scoped, tag = 'scoped memory for tpu_custom_call.1']
    #allocation4 [shape = 's32[1]{0}', space=sflag, size = 0x4, scoped, tag = 'scoped memory for tpu_custom_call.1']
    #allocation5 [shape = 'u8[4096]{0}', space=vmem, size = 0x1000, scoped, tag = 'input window, operand 1, single buffered']
    #allocation6 [shape = 's32[1]{0}', space=sflag, size = 0x4, scoped, tag = 'scoped memory for tpu_custom_call.1']
    #allocation7 [shape = 'u8[32768]{0}', space=vmem, size = 0x8000, scoped, tag = 'input window, operand 2, single buffered']
    #allocation8 [shape = 'u8[8192]{0}', space=vmem, size = 0x2000, scoped, tag = 'output window, operand 0, single buffered']
    %8 = vsyncpa [#allocation3], 0
    %9 = vsyncpa [#allocation6], 0
    %10 = vsyncpa [#allocation4], 0
    // Predicated region
    $region2: #{tpu_custom_call.1} parent=1 // pred_check
      _
    $region3: #{tpu_custom_call.1} parent=1 // pred_check_branch
      %12 = sbr.rel (0) target = $region5
    $region4: #{tpu_custom_call.1} parent=1 // pred_region
      %14 = vsyncadd [#allocation3], 0
      %s16 = sshll.u32 %s0, 4
      %s17 = int_to_ptr.hbm [resolvable:$true] %s16
      %s18 = sshll.u32 [#allocation2], 4
      %s19 = int_to_ptr.vmem [resolvable:$true] %s18
      %21 = dma.hbm_to_vmem [thread:$0]  %s17, 256, %s19, [#allocation3]
    $region5: #{tpu_custom_call.1} parent=1 // pred_fallthru
      _
    // Predicated region
    $region6: #{tpu_custom_call.1} parent=1 // pred_check
      _
    $region7: #{tpu_custom_call.1} parent=1 // pred_check_branch
      %23 = sbr.rel (0) target = $region9
    $region8: #{tpu_custom_call.1} parent=1 // pred_region
      %25 = vsyncadd [#allocation6], 0
      %s27 = sshll.u32 %s1, 4
      %s28 = int_to_ptr.hbm [resolvable:$true] %s27
      %s29 = sshll.u32 [#allocation5], 4
      %s30 = int_to_ptr.vmem [resolvable:$true] %s29
      %32 = dma.hbm_to_vmem [thread:$0]  %s28, 128, %s30, [#allocation6]
    $region9: #{tpu_custom_call.1} parent=1 // pred_fallthru
      _
    // Predicated region
    $region10: #{tpu_custom_call.1} parent=1 // pred_check
      _
    $region11: #{tpu_custom_call.1} parent=1 // pred_check_branch
      %34 = sbr.rel (0) target = $region13
    $region12: #{tpu_custom_call.1} parent=1 // pred_region
      %36 = vsyncadd [#allocation6], 0
      %s37 = sshll.u32 %s2, 4
      %s38 = int_to_ptr.hbm [resolvable:$true] %s37
      %s39 = sshll.u32 [#allocation7], 4
      %s40 = int_to_ptr.vmem [resolvable:$true] %s39
      %45 = dma.hbm_to_vmem [thread:$0]  %s38, 1024, %s40, [#allocation6], 512, 512, 32
    $region13: #{tpu_custom_call.1} parent=1 // pred_fallthru
      _
    // Predicated region
    $region14: #{tpu_custom_call.1} parent=1 // pred_check
      _
    $region15: #{tpu_custom_call.1} parent=1 // pred_check_branch
      %47 = sbr.rel (0) target = $region17
    $region16: #{tpu_custom_call.1} parent=1 // pred_region
      %49 = dma.done [#allocation3], 256
    $region17: #{tpu_custom_call.1} parent=1 // pred_fallthru
      _
    // Predicated region
    $region18: #{tpu_custom_call.1} parent=1 // pred_check
      _
    $region19: #{tpu_custom_call.1} parent=1 // pred_check_branch
      %51 = sbr.rel (0) target = $region21
    $region20: #{tpu_custom_call.1} parent=1 // pred_region
      %53 = dma.done [#allocation6], 128
    $region21: #{tpu_custom_call.1} parent=1 // pred_fallthru
      _
    // Predicated region
    $region22: #{tpu_custom_call.1} parent=1 // pred_check
      _
    $region23: #{tpu_custom_call.1} parent=1 // pred_check_branch
      %55 = sbr.rel (0) target = $region25
    $region24: #{tpu_custom_call.1} parent=1 // pred_region
      %57 = dma.done [#allocation6], 1024
    $region25: #{tpu_custom_call.1} parent=1 // pred_fallthru
      _
    %v58 = vld [vmem:[#allocation5] sm:$0xff]
    %v59 = vld [vmem:[#allocation2] ss:$4 sm:$0xf]
    %61 = vset.pattern.permute.xlu0 0
    %62 = vperm.xlu0 %61, %v58
    %v63 = vpop.permute.xlu0 %62
    %v66 = vperm.slane %v59, 0
    %v67 = vperm.slane %v59, 1
    %v68 = vperm.slane %v59, 2
    %v69 = vperm.slane %v59, 3
    %v74 = vmul.f32 %v63, %v66
    %v75 = vmul.f32 %v63, %v67
    %v76 = vmul.f32 %v63, %v68
    %v77 = vmul.f32 %v63, %v69
    %v78 = vadd.f32 %v74, 0.0
    %v79 = vadd.f32 %v75, 0.0
    %v80 = vadd.f32 %v76, 0.0
    %v81 = vadd.f32 %v77, 0.0
    %s82 = scalar_lea.vmem [#allocation2], 1
    %v83 = vld [vmem:[%s82] ss:$4 sm:$0xf]
    %84 = vset.pattern.permute.xlu0 1
    %85 = vperm.xlu0 %84, %v58
    %v86 = vpop.permute.xlu0 %85
    %v89 = vperm.slane %v83, 0
    %v90 = vperm.slane %v83, 1
    %v91 = vperm.slane %v83, 2
    %v92 = vperm.slane %v83, 3
    %v97 = vmul.f32 %v86, %v89
    %v98 = vmul.f32 %v86, %v90
    %v99 = vmul.f32 %v86, %v91
    %v100 = vmul.f32 %v86, %v92
    %v101 = vadd.f32 %v78, %v97
    %v102 = vadd.f32 %v79, %v98
    %v103 = vadd.f32 %v80, %v99
    %v104 = vadd.f32 %v81, %v100
    %s105 = scalar_lea.vmem [#allocation2], 2
    %v106 = vld [vmem:[%s105] ss:$4 sm:$0xf]
    %107 = vset.pattern.permute.xlu0 2
    %108 = vperm.xlu0 %107, %v58
    %v109 = vpop.permute.xlu0 %108
    %v112 = vperm.slane %v106, 0
    %v113 = vperm.slane %v106, 1
    %v114 = vperm.slane %v106, 2
    %v115 = vperm.slane %v106, 3
    %v120 = vmul.f32 %v109, %v112
    %v121 = vmul.f32 %v109, %v113
    %v122 = vmul.f32 %v109, %v114
    %v123 = vmul.f32 %v109, %v115
    %v124 = vadd.f32 %v101, %v120
    %v125 = vadd.f32 %v102, %v121
    %v126 = vadd.f32 %v103, %v122
    %v127 = vadd.f32 %v104, %v123
    %s128 = scalar_lea.vmem [#allocation2], 3
    %v129 = vld [vmem:[%s128] ss:$4 sm:$0xf]
    %130 = vset.pattern.permute.xlu0 3
    %131 = vperm.xlu0 %130, %v58
    %v132 = vpop.permute.xlu0 %131
    %v135 = vperm.slane %v129, 0
    %v136 = vperm.slane %v129, 1
    %v137 = vperm.slane %v129, 2
    %v138 = vperm.slane %v129, 3
    %v143 = vmul.f32 %v132, %v135
    %v144 = vmul.f32 %v132, %v136
    %v145 = vmul.f32 %v132, %v137
    %v146 = vmul.f32 %v132, %v138
    %v147 = vadd.f32 %v124, %v143
    %v148 = vadd.f32 %v125, %v144
    %v149 = vadd.f32 %v126, %v145
    %v150 = vadd.f32 %v127, %v146
    %151 = vset.pattern.permute.xlu0 21
    %152 = vperm.xlu0 %151, %v58
    %v153 = vpop.permute.xlu0 %152
    %v155 = vadd.f32 %v147, %v153
    %v156 = vadd.f32 %v148, %v153
    %v157 = vadd.f32 %v149, %v153
    %v158 = vadd.f32 %v150, %v153
    %v159 = vmul.f32 %v155, 0.70710677
    %v160 = vmul.f32 %v156, 0.70710677
    %v161 = vmul.f32 %v157, 0.70710677
    %v162 = vmul.f32 %v158, 0.70710677
    %vm163 = vcmp.lt.f32.partialorder %v159, 0.0
    %vm164 = vcmp.lt.f32.partialorder %v160, 0.0
    %vm165 = vcmp.lt.f32.partialorder %v161, 0.0
    %vm166 = vcmp.lt.f32.partialorder %v162, 0.0
    %v167 = vsel %vm163, -1.0, 1.0
    %v168 = vsel %vm164, -1.0, 1.0
    %v169 = vsel %vm165, -1.0, 1.0
    %v170 = vsel %vm166, -1.0, 1.0
    %v171 = vand.u32 2147483647, %v159
    %v172 = vand.u32 2147483647, %v160
    %v173 = vand.u32 2147483647, %v161
    %v174 = vand.u32 2147483647, %v162
    %v175 = vmul.f32 %v171, 0.3275911
    %v176 = vmul.f32 %v172, 0.3275911
    %v177 = vmul.f32 %v173, 0.3275911
    %v178 = vmul.f32 %v174, 0.3275911
    %v179 = vadd.f32 %v175, 1.0
    %v180 = vadd.f32 %v176, 1.0
    %v181 = vadd.f32 %v177, 1.0
    %v182 = vadd.f32 %v178, 1.0
    %v183 = vrcp.pop %v179
    %v184 = vrcp.pop %v180
    %v185 = vrcp.pop %v181
    %v186 = vrcp.pop %v182
    %v187 = vmul.f32 %v183, 1.0614054
    %v188 = vmul.f32 %v184, 1.0614054
    %v189 = vmul.f32 %v185, 1.0614054
    %v190 = vmul.f32 %v186, 1.0614054
    %v191 = vadd.f32 %v187, -1.4531521
    %v192 = vadd.f32 %v188, -1.4531521
    %v193 = vadd.f32 %v189, -1.4531521
    %v194 = vadd.f32 %v190, -1.4531521
    %v195 = vmul.f32 %v191, %v183
    %v196 = vmul.f32 %v192, %v184
    %v197 = vmul.f32 %v193, %v185
    %v198 = vmul.f32 %v194, %v186
    %v199 = vadd.f32 %v195, 1.4214138
    %v200 = vadd.f32 %v196, 1.4214138
    %v201 = vadd.f32 %v197, 1.4214138
    %v202 = vadd.f32 %v198, 1.4214138
    %v203 = vmul.f32 %v199, %v183
    %v204 = vmul.f32 %v200, %v184
    %v205 = vmul.f32 %v201, %v185
    %v206 = vmul.f32 %v202, %v186
    %v207 = vadd.f32 %v203, -0.28449672
    %v208 = vadd.f32 %v204, -0.28449672
    %v209 = vadd.f32 %v205, -0.28449672
    %v210 = vadd.f32 %v206, -0.28449672
    %v211 = vmul.f32 %v207, %v183
    %v212 = vmul.f32 %v208, %v184
    %v213 = vmul.f32 %v209, %v185
    %v214 = vmul.f32 %v210, %v186
    %v215 = vadd.f32 %v211, 0.2548296
    %v216 = vadd.f32 %v212, 0.2548296
    %v217 = vadd.f32 %v213, 0.2548296
    %v218 = vadd.f32 %v214, 0.2548296
    %v219 = vmul.f32 %v215, %v183
    %v220 = vmul.f32 %v216, %v184
    %v221 = vmul.f32 %v217, %v185
    %v222 = vmul.f32 %v218, %v186
    %v223 = vsub.f32 0.0, %v171
    %v224 = vsub.f32 0.0, %v172
    %v225 = vsub.f32 0.0, %v173
    %v226 = vsub.f32 0.0, %v174
    %v227 = vmul.f32 %v223, %v171
    %v228 = vmul.f32 %v224, %v172
    %v229 = vmul.f32 %v225, %v173
    %v230 = vmul.f32 %v226, %v174
    %v231 = vmul.f32 %v227, 1.442695
    %v232 = vpow.pop %v231
    %v233 = vmul.f32 %v228, 1.442695
    %v234 = vpow.pop %v233
    %v235 = vmul.f32 %v229, 1.442695
    %v236 = vpow.pop %v235
    %v237 = vmul.f32 %v230, 1.442695
    %v238 = vpow.pop %v237
    %v239 = vmul.f32 %v219, %v232
    %v240 = vmul.f32 %v220, %v234
    %v241 = vmul.f32 %v221, %v236
    %v242 = vmul.f32 %v222, %v238
    %v243 = vsub.f32 1.0, %v239
    %v244 = vsub.f32 1.0, %v240
    %v245 = vsub.f32 1.0, %v241
    %v246 = vsub.f32 1.0, %v242
    %v247 = vmul.f32 %v167, %v243
    %v248 = vmul.f32 %v168, %v244
    %v249 = vmul.f32 %v169, %v245
    %v250 = vmul.f32 %v170, %v246
    %v251 = vmul.f32 %v155, 0.5
    %v252 = vmul.f32 %v156, 0.5
    %v253 = vmul.f32 %v157, 0.5
    %v254 = vmul.f32 %v158, 0.5
    %v255 = vadd.f32 %v247, 1.0
    %v256 = vadd.f32 %v248, 1.0
    %v257 = vadd.f32 %v249, 1.0
    %v258 = vadd.f32 %v250, 1.0
    %v259 = vmul.f32 %v251, %v255
    %v260 = vmul.f32 %v252, %v256
    %v261 = vmul.f32 %v253, %v257
    %v262 = vmul.f32 %v254, %v258
    %263 = vset.pattern.permute.xlu0 22
    %264 = vperm.xlu0 %263, %v58
    %v265 = vpop.permute.xlu0 %264
    %v267 = vmul.f32 %v259, %v265
    %v268 = vmul.f32 %v260, %v265
    %v269 = vmul.f32 %v261, %v265
    %v270 = vmul.f32 %v262, %v265
    %271 = vset.pattern.permute.xlu0 23
    %272 = vperm.xlu0 %271, %v58
    %v273 = vpop.permute.xlu0 %272
    %v275 = vadd.f32 %v267, %v273
    %v276 = vadd.f32 %v268, %v273
    %v277 = vadd.f32 %v269, %v273
    %v278 = vadd.f32 %v270, %v273
    %279 = vrot.lane.b32.xlu0 %v275, 17
    %v280 = vpop.permute.xlu0 %279
    %281 = vrot.lane.b32.xlu0 %v276, 17
    %v282 = vpop.permute.xlu0 %281
    %283 = vrot.lane.b32.xlu0 %v277, 17
    %v284 = vpop.permute.xlu0 %283
    %285 = vrot.lane.b32.xlu0 %v278, 17
    %v286 = vpop.permute.xlu0 %285
    %v287 = vlaneseq
    %v288 = vand.u32 %v287, 127
    %vm289 = vcmp.lt.s32.totalorder %v288, 17
    %v290 = vsel %vm289, %v284, %v286
    %v291 = vsel %vm289, %v282, %v284
    %v292 = vsel %vm289, %v280, %v282
    %v293 = vsel %vm289, %v286, %v280
    %v294 = vld [vmem:[#allocation7] ss:$8 sm:$0xf]
    %v296 = vperm.slane %v294, 0
    %v297 = vperm.slane %v294, 1
    %v298 = vperm.slane %v294, 2
    %v299 = vperm.slane %v294, 3
    %v304 = vmul.f32 %v293, %v296
    %v305 = vmul.f32 %v292, %v297
    %v306 = vmul.f32 %v291, %v298
    %v307 = vmul.f32 %v290, %v299
    %308 = vset.pattern.permute.xlu0 4
    %309 = vperm.xlu0 %308, %v58
    %v310 = vpop.permute.xlu0 %309
    %v312 = vmul.f32 %v304, %v310
    %v313 = vmul.f32 %v305, %v310
    %v314 = vmul.f32 %v306, %v310
    %v315 = vmul.f32 %v307, %v310
    %v316 = vadd.f32 %v312, 0.0
    %v317 = vadd.f32 %v313, 0.0
    %v318 = vadd.f32 %v314, 0.0
    %v319 = vadd.f32 %v315, 0.0
    %320 = vrot.lane.b32.xlu0 %v275, 16
    %v321 = vpop.permute.xlu0 %320
    %322 = vrot.lane.b32.xlu0 %v276, 16
    %v323 = vpop.permute.xlu0 %322
    %324 = vrot.lane.b32.xlu0 %v277, 16
    %v325 = vpop.permute.xlu0 %324
    %326 = vrot.lane.b32.xlu0 %v278, 16
    %v327 = vpop.permute.xlu0 %326
    %vm328 = vcmp.lt.s32.totalorder %v288, 16
    %v329 = vsel %vm328, %v325, %v327
    %v330 = vsel %vm328, %v323, %v325
    %v331 = vsel %vm328, %v321, %v323
    %v332 = vsel %vm328, %v327, %v321
    %s333 = scalar_lea.vmem [#allocation7], 1
    %v334 = vld [vmem:[%s333] ss:$8 sm:$0xf]
    %v336 = vperm.slane %v334, 0
    %v337 = vperm.slane %v334, 1
    %v338 = vperm.slane %v334, 2
    %v339 = vperm.slane %v334, 3
    %v344 = vmul.f32 %v332, %v336
    %v345 = vmul.f32 %v331, %v337
    %v346 = vmul.f32 %v330, %v338
    %v347 = vmul.f32 %v329, %v339
    %348 = vset.pattern.permute.xlu0 5
    %349 = vperm.xlu0 %348, %v58
    %v350 = vpop.permute.xlu0 %349
    %v352 = vmul.f32 %v344, %v350
    %v353 = vmul.f32 %v345, %v350
    %v354 = vmul.f32 %v346, %v350
    %v355 = vmul.f32 %v347, %v350
    %v356 = vadd.f32 %v316, %v352
    %v357 = vadd.f32 %v317, %v353
    %v358 = vadd.f32 %v318, %v354
    %v359 = vadd.f32 %v319, %v355
    %360 = vrot.lane.b32.xlu0 %v275, 15
    %v361 = vpop.permute.xlu0 %360
    %362 = vrot.lane.b32.xlu0 %v276, 15
    %v363 = vpop.permute.xlu0 %362
    %364 = vrot.lane.b32.xlu0 %v277, 15
    %v365 = vpop.permute.xlu0 %364
    %366 = vrot.lane.b32.xlu0 %v278, 15
    %v367 = vpop.permute.xlu0 %366
    %vm368 = vcmp.lt.s32.totalorder %v288, 15
    %v369 = vsel %vm368, %v365, %v367
    %v370 = vsel %vm368, %v363, %v365
    %v371 = vsel %vm368, %v361, %v363
    %v372 = vsel %vm368, %v367, %v361
    %s373 = scalar_lea.vmem [#allocation7], 2
    %v374 = vld [vmem:[%s373] ss:$8 sm:$0xf]
    %v376 = vperm.slane %v374, 0
    %v377 = vperm.slane %v374, 1
    %v378 = vperm.slane %v374, 2
    %v379 = vperm.slane %v374, 3
    %v384 = vmul.f32 %v372, %v376
    %v385 = vmul.f32 %v371, %v377
    %v386 = vmul.f32 %v370, %v378
    %v387 = vmul.f32 %v369, %v379
    %388 = vset.pattern.permute.xlu0 6
    %389 = vperm.xlu0 %388, %v58
    %v390 = vpop.permute.xlu0 %389
    %v392 = vmul.f32 %v384, %v390
    %v393 = vmul.f32 %v385, %v390
    %v394 = vmul.f32 %v386, %v390
    %v395 = vmul.f32 %v387, %v390
    %v396 = vadd.f32 %v356, %v392
    %v397 = vadd.f32 %v357, %v393
    %v398 = vadd.f32 %v358, %v394
    %v399 = vadd.f32 %v359, %v395
    %400 = vrot.lane.b32.xlu0 %v275, 1
    %v401 = vpop.permute.xlu0 %400
    %402 = vrot.lane.b32.xlu0 %v276, 1
    %v403 = vpop.permute.xlu0 %402
    %404 = vrot.lane.b32.xlu0 %v277, 1
    %v405 = vpop.permute.xlu0 %404
    %406 = vrot.lane.b32.xlu0 %v278, 1
    %v407 = vpop.permute.xlu0 %406
    %vm408 = vcmp.lt.s32.totalorder %v288, 1
    %v409 = vsel %vm408, %v405, %v407
    %v410 = vsel %vm408, %v403, %v405
    %v411 = vsel %vm408, %v401, %v403
    %v412 = vsel %vm408, %v407, %v401
    %s413 = scalar_lea.vmem [#allocation7], 3
    %v414 = vld [vmem:[%s413] ss:$8 sm:$0xf]
    %v416 = vperm.slane %v414, 0
    %v417 = vperm.slane %v414, 1
    %v418 = vperm.slane %v414, 2
    %v419 = vperm.slane %v414, 3
    %v424 = vmul.f32 %v412, %v416
    %v425 = vmul.f32 %v411, %v417
    %v426 = vmul.f32 %v410, %v418
    %v427 = vmul.f32 %v409, %v419
    %428 = vset.pattern.permute.xlu0 7
    %429 = vperm.xlu0 %428, %v58
    %v430 = vpop.permute.xlu0 %429
    %v432 = vmul.f32 %v424, %v430
    %v433 = vmul.f32 %v425, %v430
    %v434 = vmul.f32 %v426, %v430
    %v435 = vmul.f32 %v427, %v430
    %v436 = vadd.f32 %v396, %v432
    %v437 = vadd.f32 %v397, %v433
    %v438 = vadd.f32 %v398, %v434
    %v439 = vadd.f32 %v399, %v435
    %440 = vset.pattern.permute.xlu0 8
    %441 = vperm.xlu0 %440, %v58
    %v442 = vpop.permute.xlu0 %441
    %v444 = vmul.f32 %v275, %v442
    %v445 = vmul.f32 %v276, %v442
    %v446 = vmul.f32 %v277, %v442
    %v447 = vmul.f32 %v278, %v442
    %v448 = vadd.f32 %v436, %v444
    %v449 = vadd.f32 %v437, %v445
    %v450 = vadd.f32 %v438, %v446
    %v451 = vadd.f32 %v439, %v447
    %452 = vrot.lane.b32.xlu0 %v275, 127
    %v453 = vpop.permute.xlu0 %452
    %454 = vrot.lane.b32.xlu0 %v276, 127
    %v455 = vpop.permute.xlu0 %454
    %456 = vrot.lane.b32.xlu0 %v277, 127
    %v457 = vpop.permute.xlu0 %456
    %458 = vrot.lane.b32.xlu0 %v278, 127
    %v459 = vpop.permute.xlu0 %458
    %vm460 = vcmp.lt.s32.totalorder %v288, 127
    %v461 = vsel %vm460, %v457, %v459
    %v462 = vsel %vm460, %v455, %v457
    %v463 = vsel %vm460, %v453, %v455
    %v464 = vsel %vm460, %v459, %v453
    %s465 = scalar_lea.vmem [#allocation7], 5
    %v466 = vld [vmem:[%s465] ss:$8 sm:$0xf]
    %v468 = vperm.slane %v466, 0
    %v469 = vperm.slane %v466, 1
    %v470 = vperm.slane %v466, 2
    %v471 = vperm.slane %v466, 3
    %v476 = vmul.f32 %v463, %v468
    %v477 = vmul.f32 %v462, %v469
    %v478 = vmul.f32 %v461, %v470
    %v479 = vmul.f32 %v464, %v471
    %480 = vset.pattern.permute.xlu0 9
    %481 = vperm.xlu0 %480, %v58
    %v482 = vpop.permute.xlu0 %481
    %v484 = vmul.f32 %v476, %v482
    %v485 = vmul.f32 %v477, %v482
    %v486 = vmul.f32 %v478, %v482
    %v487 = vmul.f32 %v479, %v482
    %v488 = vadd.f32 %v448, %v484
    %v489 = vadd.f32 %v449, %v485
    %v490 = vadd.f32 %v450, %v486
    %v491 = vadd.f32 %v451, %v487
    %492 = vrot.lane.b32.xlu0 %v275, 113
    %v493 = vpop.permute.xlu0 %492
    %494 = vrot.lane.b32.xlu0 %v276, 113
    %v495 = vpop.permute.xlu0 %494
    %496 = vrot.lane.b32.xlu0 %v277, 113
    %v497 = vpop.permute.xlu0 %496
    %498 = vrot.lane.b32.xlu0 %v278, 113
    %v499 = vpop.permute.xlu0 %498
    %vm500 = vcmp.lt.s32.totalorder %v288, 113
    %v501 = vsel %vm500, %v497, %v499
    %v502 = vsel %vm500, %v495, %v497
    %v503 = vsel %vm500, %v493, %v495
    %v504 = vsel %vm500, %v499, %v493
    %s505 = scalar_lea.vmem [#allocation7], 6
    %v506 = vld [vmem:[%s505] ss:$8 sm:$0xf]
    %v508 = vperm.slane %v506, 0
    %v509 = vperm.slane %v506, 1
    %v510 = vperm.slane %v506, 2
    %v511 = vperm.slane %v506, 3
    %v516 = vmul.f32 %v503, %v508
    %v517 = vmul.f32 %v502, %v509
    %v518 = vmul.f32 %v501, %v510
    %v519 = vmul.f32 %v504, %v511
    %520 = vset.pattern.permute.xlu0 10
    %521 = vperm.xlu0 %520, %v58
    %v522 = vpop.permute.xlu0 %521
    %v524 = vmul.f32 %v516, %v522
    %v525 = vmul.f32 %v517, %v522
    %v526 = vmul.f32 %v518, %v522
    %v527 = vmul.f32 %v519, %v522
    %v528 = vadd.f32 %v488, %v524
    %v529 = vadd.f32 %v489, %v525
    %v530 = vadd.f32 %v490, %v526
    %v531 = vadd.f32 %v491, %v527
    %532 = vrot.lane.b32.xlu0 %v275, 112
    %v533 = vpop.permute.xlu0 %532
    %534 = vrot.lane.b32.xlu0 %v276, 112
    %v535 = vpop.permute.xlu0 %534
    %536 = vrot.lane.b32.xlu0 %v277, 112
    %v537 = vpop.permute.xlu0 %536
    %538 = vrot.lane.b32.xlu0 %v278, 112
    %v539 = vpop.permute.xlu0 %538
    %vm540 = vcmp.lt.s32.totalorder %v288, 112
    %v541 = vsel %vm540, %v537, %v539
    %v542 = vsel %vm540, %v535, %v537
    %v543 = vsel %vm540, %v533, %v535
    %v544 = vsel %vm540, %v539, %v533
    %s545 = scalar_lea.vmem [#allocation7], 7
    %v546 = vld [vmem:[%s545] ss:$8 sm:$0xf]
    %v548 = vperm.slane %v546, 0
    %v549 = vperm.slane %v546, 1
    %v550 = vperm.slane %v546, 2
    %v551 = vperm.slane %v546, 3
    %v556 = vmul.f32 %v543, %v548
    %v557 = vmul.f32 %v542, %v549
    %v558 = vmul.f32 %v541, %v550
    %v559 = vmul.f32 %v544, %v551
    %560 = vset.pattern.permute.xlu0 11
    %561 = vperm.xlu0 %560, %v58
    %v562 = vpop.permute.xlu0 %561
    %v564 = vmul.f32 %v556, %v562
    %v565 = vmul.f32 %v557, %v562
    %v566 = vmul.f32 %v558, %v562
    %v567 = vmul.f32 %v559, %v562
    %v568 = vadd.f32 %v528, %v564
    %v569 = vadd.f32 %v529, %v565
    %v570 = vadd.f32 %v530, %v566
    %v571 = vadd.f32 %v531, %v567
    %572 = vrot.lane.b32.xlu0 %v275, 111
    %v573 = vpop.permute.xlu0 %572
    %574 = vrot.lane.b32.xlu0 %v276, 111
    %v575 = vpop.permute.xlu0 %574
    %576 = vrot.lane.b32.xlu0 %v277, 111
    %v577 = vpop.permute.xlu0 %576
    %578 = vrot.lane.b32.xlu0 %v278, 111
    %v579 = vpop.permute.xlu0 %578
    %vm580 = vcmp.lt.s32.totalorder %v288, 111
    %v581 = vsel %vm580, %v577, %v579
    %v582 = vsel %vm580, %v575, %v577
    %v583 = vsel %vm580, %v573, %v575
    %v584 = vsel %vm580, %v579, %v573
    %s585 = scalar_lea.vmem [#allocation7], 32
    %v586 = vld [vmem:[%s585] ss:$8 sm:$0xf]
    %v588 = vperm.slane %v586, 0
    %v589 = vperm.slane %v586, 1
    %v590 = vperm.slane %v586, 2
    %v591 = vperm.slane %v586, 3
    %v596 = vmul.f32 %v583, %v588
    %v597 = vmul.f32 %v582, %v589
    %v598 = vmul.f32 %v581, %v590
    %v599 = vmul.f32 %v584, %v591
    %600 = vset.pattern.permute.xlu0 12
    %601 = vperm.xlu0 %600, %v58
    %v602 = vpop.permute.xlu0 %601
    %v604 = vmul.f32 %v596, %v602
    %v605 = vmul.f32 %v597, %v602
    %v606 = vmul.f32 %v598, %v602
    %v607 = vmul.f32 %v599, %v602
    %v608 = vadd.f32 %v568, %v604
    %v609 = vadd.f32 %v569, %v605
    %v610 = vadd.f32 %v570, %v606
    %v611 = vadd.f32 %v571, %v607
    %612 = vset.pattern.permute.xlu0 24
    %613 = vperm.xlu0 %612, %v58
    %v614 = vpop.permute.xlu0 %613
    %v616 = vadd.f32 %v608, %v614
    %v617 = vadd.f32 %v609, %v614
    %v618 = vadd.f32 %v610, %v614
    %v619 = vadd.f32 %v611, %v614
    %v620 = vadd.f32 %v616, %v275
    %v621 = vadd.f32 %v617, %v276
    %v622 = vadd.f32 %v618, %v277
    %v623 = vadd.f32 %v619, %v278
    %v624 = vmul.f32 %v620, 0.70710677
    %v625 = vmul.f32 %v621, 0.70710677
    %v626 = vmul.f32 %v622, 0.70710677
    %v627 = vmul.f32 %v623, 0.70710677
    %vm628 = vcmp.lt.f32.partialorder %v624, 0.0
    %vm629 = vcmp.lt.f32.partialorder %v625, 0.0
    %vm630 = vcmp.lt.f32.partialorder %v626, 0.0
    %vm631 = vcmp.lt.f32.partialorder %v627, 0.0
    %v632 = vsel %vm628, -1.0, 1.0
    %v633 = vsel %vm629, -1.0, 1.0
    %v634 = vsel %vm630, -1.0, 1.0
    %v635 = vsel %vm631, -1.0, 1.0
    %v636 = vand.u32 2147483647, %v624
    %v637 = vand.u32 2147483647, %v625
    %v638 = vand.u32 2147483647, %v626
    %v639 = vand.u32 2147483647, %v627
    %v640 = vmul.f32 %v636, 0.3275911
    %v641 = vmul.f32 %v637, 0.3275911
    %v642 = vmul.f32 %v638, 0.3275911
    %v643 = vmul.f32 %v639, 0.3275911
    %v644 = vadd.f32 %v640, 1.0
    %v645 = vadd.f32 %v641, 1.0
    %v646 = vadd.f32 %v642, 1.0
    %v647 = vadd.f32 %v643, 1.0
    %v648 = vrcp.pop %v644
    %v649 = vrcp.pop %v645
    %v650 = vrcp.pop %v646
    %v651 = vrcp.pop %v647
    %v652 = vmul.f32 %v648, 1.0614054
    %v653 = vmul.f32 %v649, 1.0614054
    %v654 = vmul.f32 %v650, 1.0614054
    %v655 = vmul.f32 %v651, 1.0614054
    %v656 = vadd.f32 %v652, -1.4531521
    %v657 = vadd.f32 %v653, -1.4531521
    %v658 = vadd.f32 %v654, -1.4531521
    %v659 = vadd.f32 %v655, -1.4531521
    %v660 = vmul.f32 %v656, %v648
    %v661 = vmul.f32 %v657, %v649
    %v662 = vmul.f32 %v658, %v650
    %v663 = vmul.f32 %v659, %v651
    %v664 = vadd.f32 %v660, 1.4214138
    %v665 = vadd.f32 %v661, 1.4214138
    %v666 = vadd.f32 %v662, 1.4214138
    %v667 = vadd.f32 %v663, 1.4214138
    %v668 = vmul.f32 %v664, %v648
    %v669 = vmul.f32 %v665, %v649
    %v670 = vmul.f32 %v666, %v650
    %v671 = vmul.f32 %v667, %v651
    %v672 = vadd.f32 %v668, -0.28449672
    %v673 = vadd.f32 %v669, -0.28449672
    %v674 = vadd.f32 %v670, -0.28449672
    %v675 = vadd.f32 %v671, -0.28449672
    %v676 = vmul.f32 %v672, %v648
    %v677 = vmul.f32 %v673, %v649
    %v678 = vmul.f32 %v674, %v650
    %v679 = vmul.f32 %v675, %v651
    %v680 = vadd.f32 %v676, 0.2548296
    %v681 = vadd.f32 %v677, 0.2548296
    %v682 = vadd.f32 %v678, 0.2548296
    %v683 = vadd.f32 %v679, 0.2548296
    %v684 = vmul.f32 %v680, %v648
    %v685 = vmul.f32 %v681, %v649
    %v686 = vmul.f32 %v682, %v650
    %v687 = vmul.f32 %v683, %v651
    %v688 = vsub.f32 0.0, %v636
    %v689 = vsub.f32 0.0, %v637
    %v690 = vsub.f32 0.0, %v638
    %v691 = vsub.f32 0.0, %v639
    %v692 = vmul.f32 %v688, %v636
    %v693 = vmul.f32 %v689, %v637
    %v694 = vmul.f32 %v690, %v638
    %v695 = vmul.f32 %v691, %v639
    %v696 = vmul.f32 %v692, 1.442695
    %v697 = vpow.pop %v696
    %v698 = vmul.f32 %v693, 1.442695
    %v699 = vpow.pop %v698
    %v700 = vmul.f32 %v694, 1.442695
    %v701 = vpow.pop %v700
    %v702 = vmul.f32 %v695, 1.442695
    %v703 = vpow.pop %v702
    %v704 = vmul.f32 %v684, %v697
    %v705 = vmul.f32 %v685, %v699
    %v706 = vmul.f32 %v686, %v701
    %v707 = vmul.f32 %v687, %v703
    %v708 = vsub.f32 1.0, %v704
    %v709 = vsub.f32 1.0, %v705
    %v710 = vsub.f32 1.0, %v706
    %v711 = vsub.f32 1.0, %v707
    %v712 = vmul.f32 %v632, %v708
    %v713 = vmul.f32 %v633, %v709
    %v714 = vmul.f32 %v634, %v710
    %v715 = vmul.f32 %v635, %v711
    %v716 = vmul.f32 %v620, 0.5
    %v717 = vmul.f32 %v621, 0.5
    %v718 = vmul.f32 %v622, 0.5
    %v719 = vmul.f32 %v623, 0.5
    %v720 = vadd.f32 %v712, 1.0
    %v721 = vadd.f32 %v713, 1.0
    %v722 = vadd.f32 %v714, 1.0
    %v723 = vadd.f32 %v715, 1.0
    %v724 = vmul.f32 %v716, %v720
    %v725 = vmul.f32 %v717, %v721
    %v726 = vmul.f32 %v718, %v722
    %v727 = vmul.f32 %v719, %v723
    %728 = vset.pattern.permute.xlu0 25
    %729 = vperm.xlu0 %728, %v58
    %v730 = vpop.permute.xlu0 %729
    %v732 = vmul.f32 %v724, %v730
    %v733 = vmul.f32 %v725, %v730
    %v734 = vmul.f32 %v726, %v730
    %v735 = vmul.f32 %v727, %v730
    %736 = vset.pattern.permute.xlu0 26
    %737 = vperm.xlu0 %736, %v58
    %v738 = vpop.permute.xlu0 %737
    %v740 = vadd.f32 %v732, %v738
    %v741 = vadd.f32 %v733, %v738
    %v742 = vadd.f32 %v734, %v738
    %v743 = vadd.f32 %v735, %v738
    %v744 = vld [vmem:[#allocation5] sm:$0xf]
    %746 = vset.pattern.permute.xlu0 13
    %747 = vperm.xlu0 %746, %v744
    %v748 = vpop.permute.xlu0 %747
    %v750 = vperm.slane %v740, 0
    %v751 = vperm.slane %v741, 0
    %v752 = vperm.slane %v742, 0
    %v753 = vperm.slane %v743, 0
    %v754 = vmul.f32 %v748, %v750
    %v755 = vmul.f32 %v748, %v751
    %v756 = vmul.f32 %v748, %v752
    %v757 = vmul.f32 %v748, %v753
    %v758 = vadd.f32 %v754, 0.0
    %v759 = vadd.f32 %v755, 0.0
    %v760 = vadd.f32 %v756, 0.0
    %v761 = vadd.f32 %v757, 0.0
    %762 = vset.pattern.permute.xlu0 14
    %763 = vperm.xlu0 %762, %v744
    %v764 = vpop.permute.xlu0 %763
    %v766 = vperm.slane %v740, 1
    %v767 = vperm.slane %v741, 1
    %v768 = vperm.slane %v742, 1
    %v769 = vperm.slane %v743, 1
    %v770 = vmul.f32 %v764, %v766
    %v771 = vmul.f32 %v764, %v767
    %v772 = vmul.f32 %v764, %v768
    %v773 = vmul.f32 %v764, %v769
    %v774 = vadd.f32 %v758, %v770
    %v775 = vadd.f32 %v759, %v771
    %v776 = vadd.f32 %v760, %v772
    %v777 = vadd.f32 %v761, %v773
    %778 = vset.pattern.permute.xlu0 15
    %779 = vperm.xlu0 %778, %v744
    %v780 = vpop.permute.xlu0 %779
    %v782 = vperm.slane %v740, 2
    %v783 = vperm.slane %v741, 2
    %v784 = vperm.slane %v742, 2
    %v785 = vperm.slane %v743, 2
    %v786 = vmul.f32 %v780, %v782
    %v787 = vmul.f32 %v780, %v783
    %v788 = vmul.f32 %v780, %v784
    %v789 = vmul.f32 %v780, %v785
    %v790 = vadd.f32 %v774, %v786
    %v791 = vadd.f32 %v775, %v787
    %v792 = vadd.f32 %v776, %v788
    %v793 = vadd.f32 %v777, %v789
    %794 = vset.pattern.permute.xlu0 16
    %795 = vperm.xlu0 %794, %v744
    %v796 = vpop.permute.xlu0 %795
    %v798 = vperm.slane %v740, 3
    %v799 = vperm.slane %v741, 3
    %v800 = vperm.slane %v742, 3
    %v801 = vperm.slane %v743, 3
    %v802 = vmul.f32 %v796, %v798
    %v803 = vmul.f32 %v796, %v799
    %v804 = vmul.f32 %v796, %v800
    %v805 = vmul.f32 %v796, %v801
    %v806 = vadd.f32 %v790, %v802
    %v807 = vadd.f32 %v791, %v803
    %v808 = vadd.f32 %v792, %v804
    %v809 = vadd.f32 %v793, %v805
    %810 = vset.pattern.permute.xlu0 17
    %811 = vperm.xlu0 %810, %v744
    %v812 = vpop.permute.xlu0 %811
    %v814 = vperm.slane %v740, 4
    %v815 = vperm.slane %v741, 4
    %v816 = vperm.slane %v742, 4
    %v817 = vperm.slane %v743, 4
    %v818 = vmul.f32 %v812, %v814
    %v819 = vmul.f32 %v812, %v815
    %v820 = vmul.f32 %v812, %v816
    %v821 = vmul.f32 %v812, %v817
    %v822 = vadd.f32 %v806, %v818
    %v823 = vadd.f32 %v807, %v819
    %v824 = vadd.f32 %v808, %v820
    %v825 = vadd.f32 %v809, %v821
    %826 = vset.pattern.permute.xlu0 18
    %827 = vperm.xlu0 %826, %v744
    %v828 = vpop.permute.xlu0 %827
    %v830 = vperm.slane %v740, 5
    %v831 = vperm.slane %v741, 5
    %v832 = vperm.slane %v742, 5
    %v833 = vperm.slane %v743, 5
    %v834 = vmul.f32 %v828, %v830
    %v835 = vmul.f32 %v828, %v831
    %v836 = vmul.f32 %v828, %v832
    %v837 = vmul.f32 %v828, %v833
    %v838 = vadd.f32 %v822, %v834
    %v839 = vadd.f32 %v823, %v835
    %v840 = vadd.f32 %v824, %v836
    %v841 = vadd.f32 %v825, %v837
    %842 = vset.pattern.permute.xlu0 19
    %843 = vperm.xlu0 %842, %v744
    %v844 = vpop.permute.xlu0 %843
    %v846 = vperm.slane %v740, 6
    %v847 = vperm.slane %v741, 6
    %v848 = vperm.slane %v742, 6
    %v849 = vperm.slane %v743, 6
    %v850 = vmul.f32 %v844, %v846
    %v851 = vmul.f32 %v844, %v847
    %v852 = vmul.f32 %v844, %v848
    %v853 = vmul.f32 %v844, %v849
    %v854 = vadd.f32 %v838, %v850
    %v855 = vadd.f32 %v839, %v851
    %v856 = vadd.f32 %v840, %v852
    %v857 = vadd.f32 %v841, %v853
    %858 = vset.pattern.permute.xlu0 20
    %859 = vperm.xlu0 %858, %v744
    %v860 = vpop.permute.xlu0 %859
    %v862 = vperm.slane %v740, 7
    %v863 = vperm.slane %v741, 7
    %v864 = vperm.slane %v742, 7
    %v865 = vperm.slane %v743, 7
    %v866 = vmul.f32 %v860, %v862
    %v867 = vmul.f32 %v860, %v863
    %v868 = vmul.f32 %v860, %v864
    %v869 = vmul.f32 %v860, %v865
    %v870 = vadd.f32 %v854, %v866
    %v871 = vadd.f32 %v855, %v867
    %v872 = vadd.f32 %v856, %v868
    %v873 = vadd.f32 %v857, %v869
    %874 = vset.pattern.permute.xlu0 27
    %875 = vperm.xlu0 %874, %v744
    %v876 = vpop.permute.xlu0 %875
    %v878 = vadd.f32 %v870, %v876
    %v879 = vadd.f32 %v871, %v876
    %v880 = vadd.f32 %v872, %v876
    %v881 = vadd.f32 %v873, %v876
    %882 = vset.pattern.permute.xlu0 28
    %883 = vperm.xlu0 %882, %v744
    %v884 = vpop.permute.xlu0 %883
    %v886 = vmul.f32 %v878, %v884
    %v887 = vmul.f32 %v879, %v884
    %v888 = vmul.f32 %v880, %v884
    %v889 = vmul.f32 %v881, %v884
    %890 = vset.pattern.permute.xlu0 29
    %891 = vperm.xlu0 %890, %v744
    %v892 = vpop.permute.xlu0 %891
    %v894 = vadd.f32 %v886, %v892
    %v895 = vadd.f32 %v887, %v892
    %v896 = vadd.f32 %v888, %v892
    %v897 = vadd.f32 %v889, %v892
    %v902 = vrot.slane %v895, 4
    %v903 = vrot.slane %v897, 4
    %vm904 = vcmask 1043456
    %v905 = vsel %vm904, %v894, %v902
    %v906 = vsel %vm904, %v896, %v903
    %909 = vst [vmem:[#allocation8] sm:$0xff] %v905
    %910 = vst [vmem:[#allocation8 + $0x8] sm:$0xff] %v906
    // Predicated region
    $region26: #{tpu_custom_call.1} parent=1 // pred_check
      _
    $region27: #{tpu_custom_call.1} parent=1 // pred_check_branch
      %912 = sbr.rel (0) target = $region29
    $region28: #{tpu_custom_call.1} parent=1 // pred_region
      %914 = vsyncadd [#allocation4], 0
      %s916 = sshll.u32 [#allocation8], 4
      %s917 = int_to_ptr.vmem [resolvable:$true] %s916
      %s918 = sshll.u32 %s3, 4
      %s919 = int_to_ptr.hbm [resolvable:$true] %s918
      %921 = dma.vmem_to_hbm [thread:$0]  %s917, 256, %s919, [#allocation4]
    $region29: #{tpu_custom_call.1} parent=1 // pred_fallthru
      _
    // Predicated region
    $region30: #{tpu_custom_call.1} parent=1 // pred_check
      _
    $region31: #{tpu_custom_call.1} parent=1 // pred_check_branch
      %923 = sbr.rel (0) target = $region33
    $region32: #{tpu_custom_call.1} parent=1 // pred_region
      %925 = dma.done [#allocation4], 256
    $region33: #{tpu_custom_call.1} parent=1 // pred_fallthru
      _
    %926 = vsyncpa [#allocation3], 1
    %927 = vsyncpa [#allocation6], 1
    %928 = vsyncpa [#allocation4], 1

</llo_original>
